<compile_context>
chip_gen: v7x
topology: tpu7x:2x2x1
jax: 0.10.0
libtpu: 0.0.40
codegen_flags: <defaults>
</compile_context>

<pallas_src>
import jax
import jax.numpy as jnp
from jax.experimental import pallas as pl
from jax.experimental.pallas import tpu as pltpu

_MIB = 1024 * 1024
# Cap on rows per batch tile: keeps the lane-padded (tile_b,1) accumulators +
# output block to <= ~6 MiB of VMEM while still making per-step DMA >> the
# ~0.35 us per-step overhead.
_MAX_TILE_B = 2048


def _vmem_capacity_bytes():
    """Per-core VMEM capacity; conservative fallback if the query is unavailable."""
    try:
        return int(pltpu.get_tpu_info().vmem_capacity_bytes)
    except Exception:
        return 64 * _MIB  # v7x has the smallest VMEM; assume the worst case.


def _choose_tiles(B, C, bytes_x, bytes_t, block_budget):
    """Pick (tile_b, tile_c, needs_class_mask).

    Honors the (8, 128) layout rules, the per-step VMEM budget for the PAIR of
    input blocks (single-buffered), and strongly prefers tiles that need no
    class-remainder masking (tile_c == C, or an exact 128-multiple divisor).
    """
    row_bytes = bytes_x + bytes_t
    # sublane multiple: 8 rows f32, 16 rows bf16, 32 rows int8/fp8 per vreg
    sub = 8 * max(1, 4 // min(bytes_x, bytes_t))

    # ---- class (lane) tile -------------------------------------------------
    # Prefer the whole class axis per block: enables the nc==1 fast path
    # (no accumulators, no init/finalize) and never needs a mask.
    if C <= 256 or C * row_bytes * sub <= block_budget:
        tile_c, needs_mask = C, False
    else:
        min_rows = min(B, 256)
        max_tile_c = max(128, (block_budget // (min_rows * row_bytes)) // 128 * 128)
        max_tile_c = min(max_tile_c, (C // 128) * 128)
        # Largest divisor of C that is a multiple of 128 -> no remainder tile.
        tile_c, needs_mask = None, False
        d = max_tile_c
        while d >= 128:
            if C % d == 0:
                tile_c = d
                break
            d -= 128
        if tile_c is None:
            # C has no 128-multiple divisor: remainder tile, mask only applied
            # on the last class tile (gated by lax.cond in the kernel).
            tile_c, needs_mask = max_tile_c, True

    # ---- batch (sublane) tile ----------------------------------------------
    rows = block_budget // max(1, tile_c * row_bytes)
    rows = max(sub, min(rows, _MAX_TILE_B))
    if rows >= B:
        tile_b = B
        # Give v7x's two TensorCores something to split: at least 2 batch tiles
        # when the batch is big enough (harmless on 1-TC chips).
        if B >= 4 * sub:
            half = -(-B // 2)
            tile_b = -(-half // sub) * sub
    else:
        tile_b = (rows // sub) * sub
    return tile_b, tile_c, needs_mask


def _make_single_pass_kernel(targets_normalized):
    """nc == 1: whole class axis resident per block; no accumulators/pl.when."""

    def kernel(x_ref, t_ref, o_ref):
        x = x_ref[...].astype(jnp.float32)          # (tile_b, C)
        t = t_ref[...].astype(jnp.float32)          # (tile_b, C)
        m = jnp.max(x, axis=1, keepdims=True)
        l = jnp.sum(jnp.exp(x - m), axis=1, keepdims=True)
        lse = m + jnp.log(l)
        tx = jnp.sum(t * x, axis=1, keepdims=True)
        if targets_normalized:
            # Rows of `targets` sum to 1 (standard distillation): skip ts.
            o_ref[...] = lse - tx
        else:
            ts = jnp.sum(t, axis=1, keepdims=True)
            o_ref[...] = ts * lse - tx

    return kernel


def _make_streaming_kernel(C, tile_c, nc, needs_mask, targets_normalized):
    """nc > 1: online log-sum-exp over class tiles with per-row accumulators."""

    def kernel(x_ref, t_ref, o_ref, m_acc, l_acc, tx_acc, ts_acc):
        ci = pl.program_id(1)

        @pl.when(ci == 0)
        def _init():
            m_acc[...] = jnp.full_like(m_acc, -jnp.inf)
            l_acc[...] = jnp.zeros_like(l_acc)
            tx_acc[...] = jnp.zeros_like(tx_acc)
            ts_acc[...] = jnp.zeros_like(ts_acc)

        x = x_ref[...].astype(jnp.float32)          # (tile_b, tile_c)
        t = t_ref[...].astype(jnp.float32)          # (tile_b, tile_c)

        if needs_mask:
            # Only the last class tile can overrun C.  Gate the per-element
            # mask (iota + cmp + 2 selects, ~4 VALU ops/elem) behind the last
            # tile so all other grid steps skip it entirely.
            def _masked(xv, tv):
                col = ci * tile_c + jax.lax.broadcasted_iota(jnp.int32, xv.shape, 1)
                valid = col < C
                return (jnp.where(valid, xv, jnp.float32(-1e30)),
                        jnp.where(valid, tv, jnp.float32(0.0)))

            x, t = jax.lax.cond(ci == nc - 1, _masked, lambda xv, tv: (xv, tv), x, t)

        # Online (streaming) log-sum-exp across class tiles, per row.
        m_prev = m_acc[...]                                           # (tile_b, 1)
        m_new = jnp.maximum(m_prev, jnp.max(x, axis=1, keepdims=True))
        l_acc[...] = jnp.exp(m_prev - m_new) * l_acc[...] + jnp.sum(
            jnp.exp(x - m_new), axis=1, keepdims=True)
        m_acc[...] = m_new
        tx_acc[...] += jnp.sum(t * x, axis=1, keepdims=True)
        if not targets_normalized:
            ts_acc[...] += jnp.sum(t, axis=1, keepdims=True)

        @pl.when(ci == nc - 1)
        def _finalize():
            # loss_row = -sum_c t*(x - lse) = (sum_c t)*lse - sum_c t*x
            lse = m_acc[...] + jnp.log(l_acc[...])
            if targets_normalized:
                o_ref[...] = lse - tx_acc[...]
            else:
                o_ref[...] = ts_acc[...] * lse - tx_acc[...]

    return kernel


def cross_entropy_distill(inputs, targets, *, targets_normalized=False,
                          _block_budget=None):
    """inputs, targets: (B, C). Returns scalar f32 = sum(-targets*log_softmax(inputs)) / B.

    `targets_normalized=True` is an opt-in fast path for row-normalized (teacher
    softmax) targets; default semantics match the PyTorch module exactly.
    `_block_budget` is test-only (forces smaller tiles).
    """
    B, C = inputs.shape
    assert targets.shape == (B, C), (targets.shape, (B, C))

    bytes_x = jnp.dtype(inputs.dtype).itemsize
    bytes_t = jnp.dtype(targets.dtype).itemsize
    row_bytes = bytes_x + bytes_t

    vmem_cap = _vmem_capacity_bytes()
    # Per-step budget for the PAIR of input blocks, single-buffered.  The
    # pipeline double-buffers them; 2x this + accumulators + headroom must stay
    # comfortably under the per-core VMEM (64 MiB on v7x, 128 MiB v5e/v6e).
    block_budget = min(12 * _MIB, max(2 * _MIB, (vmem_cap // 2 - 8 * _MIB) // 2))
    if _block_budget is not None:
        block_budget = _block_budget

    tile_b, tile_c, needs_mask = _choose_tiles(B, C, bytes_x, bytes_t, block_budget)
    nb = pl.cdiv(B, tile_b)
    nc = pl.cdiv(C, tile_c)

    # Real VMEM need: double-buffered inputs + lane-padded (tile_b,1) f32 blocks
    # (each pads to 128 lanes -> tile_b*512 B) + headroom for internal scratch.
    in_block_bytes = tile_b * tile_c * row_bytes
    acc_out_bytes = (4 * tile_b * 512 if nc > 1 else 0) + 2 * tile_b * 512
    vmem_limit = int(min(vmem_cap - 8 * _MIB,
                         max(32 * _MIB, 2 * in_block_bytes + acc_out_bytes + 8 * _MIB)))

    cost = pl.CostEstimate(
        flops=6 * B * C,
        transcendentals=B * C + B,
        bytes_accessed=B * C * row_bytes + B * 4,
    )

    if nc == 1:
        per_row = pl.pallas_call(
            _make_single_pass_kernel(targets_normalized),
            out_shape=jax.ShapeDtypeStruct((B, 1), jnp.float32),
            grid_spec=pltpu.PrefetchScalarGridSpec(
                num_scalar_prefetch=0,
                grid=(nb,),
                in_specs=[
                    pl.BlockSpec((tile_b, tile_c), lambda bi: (bi, 0)),
                    pl.BlockSpec((tile_b, tile_c), lambda bi: (bi, 0)),
                ],
                out_specs=pl.BlockSpec((tile_b, 1), lambda bi: (bi, 0)),
            ),
            compiler_params=pltpu.CompilerParams(
                dimension_semantics=("parallel",),
                vmem_limit_bytes=vmem_limit,
            ),
            cost_estimate=cost,
        )(inputs, targets)
    else:
        per_row = pl.pallas_call(
            _make_streaming_kernel(C, tile_c, nc, needs_mask, targets_normalized),
            out_shape=jax.ShapeDtypeStruct((B, 1), jnp.float32),
            grid_spec=pltpu.PrefetchScalarGridSpec(
                num_scalar_prefetch=0,
                grid=(nb, nc),
                in_specs=[
                    pl.BlockSpec((tile_b, tile_c), lambda bi, ci: (bi, ci)),
                    pl.BlockSpec((tile_b, tile_c), lambda bi, ci: (bi, ci)),
                ],
                out_specs=pl.BlockSpec((tile_b, 1), lambda bi, ci: (bi, 0)),
                scratch_shapes=[pltpu.VMEM((tile_b, 1), jnp.float32)] * 4,
            ),
            compiler_params=pltpu.CompilerParams(
                dimension_semantics=("parallel", "arbitrary"),
                vmem_limit_bytes=vmem_limit,
            ),
            cost_estimate=cost,
        )(inputs, targets)

    # (-t * log_probs).mean(0).sum() == sum(per-row losses) / B
    return (jnp.sum(per_row) / jnp.float32(B)).astype(jnp.float32)


def _reference(inputs, targets):
    logp = jax.nn.log_softmax(inputs.astype(jnp.float32), axis=1)
    return jnp.sum(jnp.mean(-targets.astype(jnp.float32) * logp, axis=0))


if __name__ == "__main__":
    key = jax.random.PRNGKey(0)

    # --- Test 1: small shape, nc == 1 fast-path kernel ----------------------
    B, C = 8, 32
    k1, k2 = jax.random.split(key)
    inputs = jax.random.normal(k1, (B, C), dtype=jnp.float32)
    # soft targets from a teacher: rows sum to 1 (typical distillation target)
    targets = jax.nn.softmax(jax.random.normal(k2, (B, C), dtype=jnp.float32), axis=1)

    loss = jax.block_until_ready(cross_entropy_distill(inputs, targets))
    ref = jax.block_until_ready(_reference(inputs, targets))
    assert jnp.allclose(loss, ref, rtol=1e-5, atol=1e-5), (loss, ref)

    # --- Test 2: force the streaming (nc > 1) kernel with a class remainder ---
    # Small shapes, but a tiny block budget exercises the multi-tile online-LSE
    # path, the batch split (nb == 2), and the last-tile mask gating.
    B2, C2 = 32, 520
    k3, k4 = jax.random.split(k2)
    inputs2 = jax.random.normal(k3, (B2, C2), dtype=jnp.float32)
    targets2 = jax.nn.softmax(jax.random.normal(k4, (B2, C2), dtype=jnp.float32), axis=1)

    loss2 = jax.block_until_ready(
        cross_entropy_distill(inputs2, targets2, _block_budget=16 * 1024))
    ref2 = jax.block_until_ready(_reference(inputs2, targets2))
    assert jnp.allclose(loss2, ref2, rtol=1e-5, atol=1e-5), (loss2, ref2)

    print("KERNEL_OK")
</pallas_src>

<mosaic_0001>
module attributes {stable_mosaic.version = 11 : i64} {
  func.func @kernel(%arg0: i32, %arg1: memref<8x32xf32, #tpu.memory_space<vmem>>, %arg2: memref<8x32xf32, #tpu.memory_space<vmem>>, %arg3: memref<8x1xf32, #tpu.memory_space<vmem>>) attributes {dimension_semantics = [#tpu.dimension_semantics<parallel>], iteration_bounds = array<i64: 1>, scalar_prefetch = 0 : i64, scratch_operands = 0 : i64, tpu.core_type = #tpu.core_type<tc>, window_params = [{transform_indices = @transform_0, window_bounds = array<i64: 8, 32>}, {transform_indices = @transform_1, window_bounds = array<i64: 8, 32>}, {transform_indices = @transform_2, window_bounds = array<i64: 8, 1>}]} {
    %c0 = arith.constant 0 : index
    %c0_0 = arith.constant 0 : index
    %0 = vector.load %arg1[%c0, %c0_0] : memref<8x32xf32, #tpu.memory_space<vmem>>, vector<8x32xf32>
    %c0_1 = arith.constant 0 : index
    %c0_2 = arith.constant 0 : index
    %1 = vector.load %arg2[%c0_1, %c0_2] : memref<8x32xf32, #tpu.memory_space<vmem>>, vector<8x32xf32>
    %cst = arith.constant dense<0xFF800000> : vector<8xf32>
    %2 = vector.multi_reduction <maximumf>, %0, %cst [1] : vector<8x32xf32> to vector<8xf32>
    %3 = vector.shape_cast %2 : vector<8xf32> to vector<8x1xf32>
    %4 = vector.broadcast %3 : vector<8x1xf32> to vector<8x32xf32>
    %5 = arith.subf %0, %4 : vector<8x32xf32>
    %6 = math.exp %5 : vector<8x32xf32>
    %cst_3 = arith.constant dense<0.000000e+00> : vector<8xf32>
    %7 = vector.multi_reduction <add>, %6, %cst_3 [1] : vector<8x32xf32> to vector<8xf32>
    %8 = vector.shape_cast %7 : vector<8xf32> to vector<8x1xf32>
    %9 = math.log %8 : vector<8x1xf32>
    %10 = arith.addf %3, %9 : vector<8x1xf32>
    %11 = arith.mulf %1, %0 : vector<8x32xf32>
    %cst_4 = arith.constant dense<0.000000e+00> : vector<8xf32>
    %12 = vector.multi_reduction <add>, %11, %cst_4 [1] : vector<8x32xf32> to vector<8xf32>
    %13 = vector.shape_cast %12 : vector<8xf32> to vector<8x1xf32>
    %cst_5 = arith.constant dense<0.000000e+00> : vector<8xf32>
    %14 = vector.multi_reduction <add>, %1, %cst_5 [1] : vector<8x32xf32> to vector<8xf32>
    %15 = vector.shape_cast %14 : vector<8xf32> to vector<8x1xf32>
    %16 = arith.mulf %15, %10 : vector<8x1xf32>
    %17 = arith.subf %16, %13 : vector<8x1xf32>
    %c0_6 = arith.constant 0 : index
    %c0_7 = arith.constant 0 : index
    %18 = vector.load %arg3[%c0_6, %c0_7] : memref<8x1xf32, #tpu.memory_space<vmem>>, vector<8x1xf32>
    tpu.vector_store %arg3[%c0_6, %c0_7], %17 {strides = array<i32>} : memref<8x1xf32, #tpu.memory_space<vmem>>, vector<8x1xf32>,
    return
  }
  func.func @transform_0(%arg0: i32) -> (i32, i32) {
    %c0_i32 = arith.constant 0 : i32
    %c0_i32_0 = arith.constant 0 : i32
    return %arg0, %c0_i32 : i32, i32
  }
  func.func @transform_1(%arg0: i32) -> (i32, i32) {
    %c0_i32 = arith.constant 0 : i32
    %c0_i32_0 = arith.constant 0 : i32
    return %arg0, %c0_i32 : i32, i32
  }
  func.func @transform_2(%arg0: i32) -> (i32, i32) {
    %c0_i32 = arith.constant 0 : i32
    %c0_i32_0 = arith.constant 0 : i32
    return %arg0, %c0_i32 : i32, i32
  }
}

</mosaic_0001>

<llo_original>
// kernel: tpu_custom_call.1
$region0: #{tpu_custom_call.1}
  #allocation0 [shape = 'u32[]', space=smem, size = 0x4, offset = 0x4, fixed_abs, tag = 'smem constant byte address 0x4 - core index']
  #allocation1 [shape = 'u32[144,128]{1,0:T(1,128)}', space=vmem, size = 0x12000, scoped, tag = 'internal scratch']
  %s0 = inlined_call_operand.hbm [shape: f32[8,32], index: 0, kind: input, shape index: {}]
  %s1 = inlined_call_operand.hbm [shape: f32[8,32], index: 1, kind: input, shape index: {}]
  %s2 = inlined_call_operand.vmem [shape: f32[8,1], index: 2, kind: output, shape index: {}]
  %s3 = sld [smem:[#allocation0]]
  $region26: #{tpu_custom_call.1} parent=0
    _
  %s5 = ssub.s32 1, %s3
  %s6 = scalar_select 0, %s5, %s3
  $region1: #{tpu_custom_call.1} parent=0
    #allocation2 [shape = 'u8[4096]{0}', space=vmem, size = 0x1000, scoped, tag = 'input window, operand 0, single buffered']
    #allocation3 [shape = 's32[1]{0}', space=sflag, size = 0x4, scoped, tag = 'scoped memory for tpu_custom_call.1']
    #allocation4 [shape = 'u8[4096]{0}', space=vmem, size = 0x1000, scoped, tag = 'input window, operand 1, single buffered']
    #allocation5 [shape = 's32[1]{0}', space=sflag, size = 0x4, scoped, tag = 'scoped memory for tpu_custom_call.1']
    %7 = vsyncpa [#allocation3], 0
    %8 = vsyncpa [#allocation5], 0
    // Predicated region
    $region2: #{tpu_custom_call.1} parent=1 // pred_check
      _
    $region3: #{tpu_custom_call.1} parent=1 // pred_check_branch
      %10 = sbr.rel (0) target = $region5
    $region4: #{tpu_custom_call.1} parent=1 // pred_region
      %s12 = ssub.s32 128, 128
      %13 = vsyncadd [#allocation3], %s12
      %s15 = sshll.u32 [#allocation2], 4
      %s16 = int_to_ptr.vmem [resolvable:$true] %s15
      %18 = dma.hbm_to_vmem [thread:$0]  %s0, 128, %s16, [#allocation3]
    $region5: #{tpu_custom_call.1} parent=1 // pred_fallthru
      _
    // Predicated region
    $region6: #{tpu_custom_call.1} parent=1 // pred_check
      _
    $region7: #{tpu_custom_call.1} parent=1 // pred_check_branch
      %20 = sbr.rel (0) target = $region9
    $region8: #{tpu_custom_call.1} parent=1 // pred_region
      %s22 = ssub.s32 128, 128
      %23 = vsyncadd [#allocation5], %s22
      %s25 = sshll.u32 [#allocation4], 4
      %s26 = int_to_ptr.vmem [resolvable:$true] %s25
      %28 = dma.hbm_to_vmem [thread:$0]  %s1, 128, %s26, [#allocation5]
    $region9: #{tpu_custom_call.1} parent=1 // pred_fallthru
      _
    // Predicated region
    $region10: #{tpu_custom_call.1} parent=1 // pred_check
      _
    $region11: #{tpu_custom_call.1} parent=1 // pred_check_branch
      %30 = sbr.rel (0) target = $region13
    $region12: #{tpu_custom_call.1} parent=1 // pred_region
      %31 = dma.done [#allocation3], 128
    $region13: #{tpu_custom_call.1} parent=1 // pred_fallthru
      _
    // Predicated region
    $region14: #{tpu_custom_call.1} parent=1 // pred_check
      _
    $region15: #{tpu_custom_call.1} parent=1 // pred_check_branch
      %33 = sbr.rel (0) target = $region17
    $region16: #{tpu_custom_call.1} parent=1 // pred_region
      %34 = dma.done [#allocation5], 128
    $region17: #{tpu_custom_call.1} parent=1 // pred_fallthru
      _
    %v35 = vld [vmem:[#allocation2] sm:$0xff]
    %v36 = vld [vmem:[#allocation4] sm:$0xff]
    %vm37 = vcmask 261120
    %v38 = vsel %vm37, %v35, -inf
    %39 = vmax.xlane.f32.xlu0 %v38
    %v40 = vpop.xlane.xlu0 %39
    %v41 = vsub.f32 %v35, %v40
    %v42 = vmul.f32 %v41, 1.442695
    %v43 = vpow.pop %v42
    %v44 = vsel %vm37, %v43, 0.0
    %45 = vadd.xlane.f32.xlu0 %v44
    %v46 = vpop.xlane.xlu0 %45
    %v47 = vlog2.pop %v46
    %v48 = vmul.f32 %v47, 0.6931472
    %v49 = vadd.f32 %v40, %v48
    %v50 = vmul.f32 %v36, %v35
    %v51 = vsel %vm37, %v50, 0.0
    %52 = vadd.xlane.f32.xlu0 %v51
    %v53 = vpop.xlane.xlu0 %52
    %v54 = vsel %vm37, %v36, 0.0
    %55 = vadd.xlane.f32.xlu0 %v54
    %v56 = vpop.xlane.xlu0 %55
    %v57 = vmul.f32 %v56, %v49
    %v58 = vsub.f32 %v57, %v53
    %vm59 = vcmask 7168
    %60 = vst.msk [vmem:[%s2] sm:$0xff] %vm59, %v58
    // Predicated region
    $region18: #{tpu_custom_call.1} parent=1 // pred_check
      _
    $region19: #{tpu_custom_call.1} parent=1 // pred_check_branch
      %62 = sbr.rel (0) target = $region21
    $region20: #{tpu_custom_call.1} parent=1 // pred_region
      _
    $region21: #{tpu_custom_call.1} parent=1 // pred_fallthru
      _
    // Predicated region
    $region22: #{tpu_custom_call.1} parent=1 // pred_check
      _
    $region23: #{tpu_custom_call.1} parent=1 // pred_check_branch
      %64 = sbr.rel (0) target = $region25
    $region24: #{tpu_custom_call.1} parent=1 // pred_region
      _
    $region25: #{tpu_custom_call.1} parent=1 // pred_fallthru
      _
    %65 = vsyncpa [#allocation3], 1
    %66 = vsyncpa [#allocation5], 1

</llo_original>
